<compile_context>
chip_gen: v6e
topology: v6e:2x2x1
jax: 0.10.0
libtpu: 0.0.40
codegen_flags: <defaults>
</compile_context>

<pallas_src>
import functools

import jax
import jax.numpy as jnp
from jax.experimental import pallas as pl
from jax.experimental.pallas import tpu as pltpu


def _round_up(x, m):
    return ((x + m - 1) // m) * m


def _physical_vmem_bytes():
    # Query the chip; fall back to the v7x-safe 64 MiB if the API is unavailable.
    try:
        return int(pltpu.get_tpu_info().vmem_capacity_bytes)
    except Exception:
        return 64 << 20


def _pick_kv_tile(L, pref=256):
    # Largest multiple-of-8 divisor of L not exceeding `pref` (else full L).
    if L <= pref:
        return L
    t = (pref // 8) * 8
    while t >= 8:
        if L % t == 0:
            return t
        t -= 8
    return L


# --------------------- Step 1: shared K/V projection --------------------------
def _kv_proj_kernel(k_ref, v_ref, wk_ref, bk_ref, wv_ref, bv_ref,
                    kp_ref, vp_ref, *, num_heads, head_dim):
    # k_ref/v_ref: (tile_l, H) bf16; wk/wv: (H, H) bf16; bk/bv: (1, H) f32.
    tl = k_ref.shape[0]
    kp = jnp.dot(k_ref[...], wk_ref[...],
                 preferred_element_type=jnp.float32) + bk_ref[...]
    vp = jnp.dot(v_ref[...], wv_ref[...],
                 preferred_element_type=jnp.float32) + bv_ref[...]
    # Head-split + transpose ONCE here (K/V are batch-shared / grid-invariant in the
    # attention call) and store bf16 so the attention MXU gets true bf16 operands.
    kp_ref[...] = jnp.transpose(kp.reshape(tl, num_heads, head_dim),
                                (1, 0, 2)).astype(kp_ref.dtype)
    vp_ref[...] = jnp.transpose(vp.reshape(tl, num_heads, head_dim),
                                (1, 0, 2)).astype(vp_ref.dtype)


# --------------------- Step 2: batched attention kernel -----------------------
def _attn_kernel(q_ref, kp_ref, vp_ref, wq_ref, bq_ref, wo_ref, bo_ref, o_ref,
                 *, num_heads, head_dim):
    # q_ref:        (Tm, H) bf16 tile of the flattened (B*L, H) queries.
    # kp_ref/vp_ref: (nh, Lk, d) bf16 projected, head-split keys/values (resident).
    tm = q_ref.shape[0]

    # Q projection: bf16 x bf16 MXU, f32 accumulation.  The softmax scale is already
    # folded into wq/bq by the wrapper.
    qp = jnp.dot(q_ref[...], wq_ref[...],
                 preferred_element_type=jnp.float32) + bq_ref[...]
    qh = jnp.transpose(qp.reshape(tm, num_heads, head_dim),
                       (1, 0, 2)).astype(jnp.bfloat16)                     # (nh, Tm, d)

    kh = kp_ref[...]                                                        # (nh, Lk, d)
    vh = vp_ref[...]                                                        # (nh, Lk, d)

    # Scores: bf16 x bf16, f32 accumulation; heads are the dot_general batch dim.
    scores = jnp.einsum("hmd,hkd->hmk", qh, kh,
                        preferred_element_type=jnp.float32)                 # (nh, Tm, Lk)

    # Row-wise softmax in f32; divide routed to EUP via approx reciprocal.
    scores_max = jnp.max(scores, axis=-1, keepdims=True)
    probs = jnp.exp(scores - scores_max)
    denom = jnp.sum(probs, axis=-1, keepdims=True)
    probs = probs * pl.reciprocal(denom, approx=True)

    # P @ V: bf16 x bf16, f32 accumulation.
    attn = jnp.einsum("hmk,hkd->hmd", probs.astype(jnp.bfloat16), vh,
                      preferred_element_type=jnp.float32)                   # (nh, Tm, d)
    attn = jnp.transpose(attn, (1, 0, 2)).reshape(
        tm, num_heads * head_dim).astype(jnp.bfloat16)                      # (Tm, H) bf16

    # Output projection: bf16 x bf16, f32 accumulation.
    out = jnp.dot(attn, wo_ref[...],
                  preferred_element_type=jnp.float32) + bo_ref[...]
    o_ref[...] = out.astype(o_ref.dtype)


def cross_attention(q, k, v, params, *, num_heads, block_m=256):
    """q: (B, L, H); k, v: (1, L, H). Returns (B, L, H) float32."""
    B, L, H = q.shape
    assert k.shape == (1, L, H) and v.shape == (1, L, H)
    head_dim = H // num_heads
    assert head_dim * num_heads == H, "hidden_size must be divisible by num_heads"
    scale = head_dim ** (-0.5)
    nh, d = num_heads, head_dim
    f32, bf = 4, 2

    wq, bq, wk, bk, wv, bv, wo, bo = params
    vmem_budget = int(0.9 * _physical_vmem_bytes())

    # bf16 MXU operands (f32 accumulation inside the kernels); fold the softmax scale
    # into the Q projection once, here.
    wq_b = (wq * scale).astype(jnp.bfloat16)
    bq_s = bq * scale                                   # stays f32 (added post-accumulate)
    wk_b = wk.astype(jnp.bfloat16)
    wv_b = wv.astype(jnp.bfloat16)
    wo_b = wo.astype(jnp.bfloat16)
    k2 = k.reshape(L, H).astype(jnp.bfloat16)
    v2 = v.reshape(L, H).astype(jnp.bfloat16)

    # ---------------- Step 1: project K and V exactly once (batch-shared) ----
    tile_l = _pick_kv_tile(L)
    n_l = L // tile_l

    est_kv = (4 * tile_l * H * bf            # k, v input tiles (double-buffered)
              + 4 * H * H * bf               # wk, wv
              + 4 * H * f32                  # bk, bv
              + 4 * nh * tile_l * d * bf     # kp, vp output tiles (double-buffered)
              + 2 * tile_l * H * f32)        # f32 projection intermediates
    kv_vmem_limit = int(min(vmem_budget, max(32 << 20, 2 * est_kv)))

    kv_kernel = functools.partial(_kv_proj_kernel, num_heads=nh, head_dim=d)
    kp, vp = pl.pallas_call(
        kv_kernel,
        out_shape=(jax.ShapeDtypeStruct((nh, L, d), jnp.bfloat16),
                   jax.ShapeDtypeStruct((nh, L, d), jnp.bfloat16)),
        grid_spec=pltpu.PrefetchScalarGridSpec(
            num_scalar_prefetch=0,
            grid=(n_l,),
            in_specs=[pl.BlockSpec((tile_l, H), lambda i: (i, 0)),   # k
                      pl.BlockSpec((tile_l, H), lambda i: (i, 0)),   # v
                      pl.BlockSpec((H, H), lambda i: (0, 0)),        # wk
                      pl.BlockSpec((1, H), lambda i: (0, 0)),        # bk
                      pl.BlockSpec((H, H), lambda i: (0, 0)),        # wv
                      pl.BlockSpec((1, H), lambda i: (0, 0))],       # bv
            out_specs=[pl.BlockSpec((nh, tile_l, d), lambda i: (0, i, 0)),
                       pl.BlockSpec((nh, tile_l, d), lambda i: (0, i, 0))],
        ),
        compiler_params=pltpu.CompilerParams(
            dimension_semantics=("parallel",),
            vmem_limit_bytes=kv_vmem_limit),
    )(k2, v2, wk_b, bk, wv_b, bv)

    # -------- Step 2: attention with batch folded into the MXU M dimension ---
    M = B * L
    Mp8 = _round_up(M, 8)
    Tm = max(8, (min(block_m, Mp8) // 8) * 8)
    n_m = pl.cdiv(Mp8, Tm)
    if n_m == 1 and Mp8 > 8:
        # Force >= 2 row tiles so the "parallel" grid axis can shard across the two
        # TensorCores on v7x (no-op cost on single-TC v5e/v6e).
        Tm = max(8, _round_up((Mp8 + 1) // 2, 8))
        n_m = pl.cdiv(Mp8, Tm)
    Mp = n_m * Tm

    qf = q.reshape(M, H).astype(jnp.bfloat16)
    if Mp != M:
        qf = jnp.pad(qf, ((0, Mp - M), (0, 0)))   # padded rows are sliced off below

    # VMEM residency estimate (includes bf16 copies / intermediates); kp, vp and
    # the weights are single-buffered (grid-invariant).
    est = (2 * Tm * H * bf                   # q input tiles (double-buffered)
           + 2 * Tm * H * f32                # output tiles (double-buffered)
           + 2 * nh * L * d * bf             # kp + vp (single-buffered)
           + 2 * H * H * bf                  # wq + wo (single-buffered)
           + 2 * H * f32                     # bq + bo
           + Tm * H * f32                    # qp
           + nh * Tm * d * (bf + f32)        # qh (bf16) + attn (f32)
           + nh * Tm * L * (2 * f32 + bf)    # scores, probs (f32) + probs (bf16)
           + Tm * H * (bf + f32))            # attn (bf16) + out (f32)
    vmem_limit = int(min(vmem_budget, max(32 << 20, 2 * est)))

    attn_kernel = functools.partial(_attn_kernel, num_heads=nh, head_dim=d)

    def call_attention(single_buffer):
        if single_buffer:
            const = lambda shape, imap: pl.BlockSpec(
                shape, imap, pipeline_mode=pl.Buffered(1))
        else:
            const = lambda shape, imap: pl.BlockSpec(shape, imap)
        return pl.pallas_call(
            attn_kernel,
            out_shape=jax.ShapeDtypeStruct((Mp, H), jnp.float32),
            grid_spec=pltpu.PrefetchScalarGridSpec(
                num_scalar_prefetch=0,
                grid=(n_m,),
                in_specs=[
                    pl.BlockSpec((Tm, H), lambda i: (i, 0)),       # q tile (per step)
                    const((nh, L, d), lambda i: (0, 0, 0)),        # kp (grid-invariant)
                    const((nh, L, d), lambda i: (0, 0, 0)),        # vp (grid-invariant)
                    const((H, H), lambda i: (0, 0)),               # wq (scale folded)
                    const((1, H), lambda i: (0, 0)),               # bq (scale folded)
                    const((H, H), lambda i: (0, 0)),               # wo
                    const((1, H), lambda i: (0, 0)),               # bo
                ],
                out_specs=pl.BlockSpec((Tm, H), lambda i: (i, 0)),
            ),
            compiler_params=pltpu.CompilerParams(
                dimension_semantics=("parallel",),
                vmem_limit_bytes=vmem_limit),
        )(qf, kp, vp, wq_b, bq_s, wo_b, bo)

    try:
        out = call_attention(True)
    except Exception:
        # pipeline_mode=pl.Buffered(1) is a newer API; fall back to default
        # double-buffering of the grid-invariant blocks if unsupported.
        out = call_attention(False)

    return out[:M].reshape(B, L, H)


def _reference(q, k, v, params, *, num_heads):
    # Pure-JAX (f32) reference mirroring the PyTorch forward.
    wq, bq, wk, bk, wv, bv, wo, bo = params
    B, L, H = q.shape
    d = H // num_heads
    qp = q @ wq + bq[0]
    kp = k @ wk + bk[0]
    vp = v @ wv + bv[0]
    qh = qp.reshape(B, L, num_heads, d).transpose(0, 2, 1, 3)
    kh = kp.reshape(1, L, num_heads, d).transpose(0, 2, 1, 3)
    vh = vp.reshape(1, L, num_heads, d).transpose(0, 2, 1, 3)
    kh = jnp.broadcast_to(kh, (B, num_heads, L, d))
    vh = jnp.broadcast_to(vh, (B, num_heads, L, d))
    scores = jnp.einsum("bhqd,bhkd->bhqk", qh, kh) * (d ** -0.5)
    probs = jax.nn.softmax(scores, axis=-1)
    out = jnp.einsum("bhqk,bhkd->bhqd", probs, vh)
    out = out.transpose(0, 2, 1, 3).reshape(B, L, H)
    return out @ wo + bo[0]


if __name__ == "__main__":
    B, L, H = 2, 8, 32
    num_heads = 4

    key = jax.random.PRNGKey(0)
    ks = jax.random.split(key, 11)

    q = jax.random.normal(ks[0], (B, L, H), dtype=jnp.float32)
    k = jax.random.normal(ks[1], (1, L, H), dtype=jnp.float32)
    v = jax.random.normal(ks[2], (1, L, H), dtype=jnp.float32)

    # Deterministic "Linear" parameters; weights stored as (in, out) = W^T.
    def init_linear(kw, kb):
        w = jax.random.normal(kw, (H, H), dtype=jnp.float32) * (1.0 / (H ** 0.5))
        b = jax.random.normal(kb, (1, H), dtype=jnp.float32) * 0.02
        return w, b

    wq, bq = init_linear(ks[3], ks[4])
    wk, bk = init_linear(ks[5], ks[6])
    wv, bv = init_linear(ks[7], ks[8])
    wo, bo = init_linear(ks[9], ks[10])
    params = (wq, bq, wk, bk, wv, bv, wo, bo)

    out = cross_attention(q, k, v, params, num_heads=num_heads)
    out = jax.block_until_ready(out)

    ref = _reference(q, k, v, params, num_heads=num_heads)
    assert out.shape == (B, L, H)
    # All matmuls (projections + attention) use bf16 operands with f32 accumulation,
    # and the softmax denominator uses an approximate reciprocal, so compare against
    # the exact-f32 reference with a bf16-appropriate tolerance.
    assert jnp.allclose(out, ref, atol=1e-1, rtol=1e-1), "mismatch vs reference"

    print("KERNEL_OK")
</pallas_src>

<mosaic_0001>
module attributes {stable_mosaic.version = 11 : i64} {
  func.func @_kv_proj_kernel(%arg0: i32, %arg1: memref<8x32xbf16, #tpu.memory_space<vmem>>, %arg2: memref<8x32xbf16, #tpu.memory_space<vmem>>, %arg3: memref<32x32xbf16, #tpu.memory_space<vmem>>, %arg4: memref<1x32xf32, #tpu.memory_space<vmem>>, %arg5: memref<32x32xbf16, #tpu.memory_space<vmem>>, %arg6: memref<1x32xf32, #tpu.memory_space<vmem>>, %arg7: memref<4x8x8xbf16, #tpu.memory_space<vmem>>, %arg8: memref<4x8x8xbf16, #tpu.memory_space<vmem>>) attributes {dimension_semantics = [#tpu.dimension_semantics<parallel>], iteration_bounds = array<i64: 1>, scalar_prefetch = 0 : i64, scratch_operands = 0 : i64, tpu.core_type = #tpu.core_type<tc>, window_params = [{transform_indices = @transform_0, window_bounds = array<i64: 8, 32>}, {transform_indices = @transform_1, window_bounds = array<i64: 8, 32>}, {pipeline_mode = #tpu.pipeline_mode<synchronous>, transform_indices = @transform_2, window_bounds = array<i64: 32, 32>}, {pipeline_mode = #tpu.pipeline_mode<synchronous>, transform_indices = @transform_3, window_bounds = array<i64: 1, 32>}, {pipeline_mode = #tpu.pipeline_mode<synchronous>, transform_indices = @transform_4, window_bounds = array<i64: 32, 32>}, {pipeline_mode = #tpu.pipeline_mode<synchronous>, transform_indices = @transform_5, window_bounds = array<i64: 1, 32>}, {transform_indices = @transform_6, window_bounds = array<i64: 4, 8, 8>}, {transform_indices = @transform_7, window_bounds = array<i64: 4, 8, 8>}]} {
    %c0 = arith.constant 0 : index
    %c0_0 = arith.constant 0 : index
    %0 = vector.load %arg1[%c0, %c0_0] : memref<8x32xbf16, #tpu.memory_space<vmem>>, vector<8x32xbf16>
    %c0_1 = arith.constant 0 : index
    %c0_2 = arith.constant 0 : index
    %1 = vector.load %arg3[%c0_1, %c0_2] : memref<32x32xbf16, #tpu.memory_space<vmem>>, vector<32x32xbf16>
    %cst = arith.constant dense<0.000000e+00> : vector<8x32xf32>
    %2 = tpu.matmul %0, %1, %cst {dimension_numbers = #tpu.dot_dimension_numbers<[1], [0], [0], [1], [0, 0, 1, 1], [], []>} : vector<8x32xbf16>, vector<32x32xbf16>, vector<8x32xf32> -> vector<8x32xf32>
    %c0_3 = arith.constant 0 : index
    %c0_4 = arith.constant 0 : index
    %3 = vector.load %arg4[%c0_3, %c0_4] : memref<1x32xf32, #tpu.memory_space<vmem>>, vector<1x32xf32>
    %4 = vector.broadcast %3 : vector<1x32xf32> to vector<8x32xf32>
    %5 = arith.addf %2, %4 : vector<8x32xf32>
    %c0_5 = arith.constant 0 : index
    %c0_6 = arith.constant 0 : index
    %6 = vector.load %arg2[%c0_5, %c0_6] : memref<8x32xbf16, #tpu.memory_space<vmem>>, vector<8x32xbf16>
    %c0_7 = arith.constant 0 : index
    %c0_8 = arith.constant 0 : index
    %7 = vector.load %arg5[%c0_7, %c0_8] : memref<32x32xbf16, #tpu.memory_space<vmem>>, vector<32x32xbf16>
    %cst_9 = arith.constant dense<0.000000e+00> : vector<8x32xf32>
    %8 = tpu.matmul %6, %7, %cst_9 {dimension_numbers = #tpu.dot_dimension_numbers<[1], [0], [0], [1], [0, 0, 1, 1], [], []>} : vector<8x32xbf16>, vector<32x32xbf16>, vector<8x32xf32> -> vector<8x32xf32>
    %c0_10 = arith.constant 0 : index
    %c0_11 = arith.constant 0 : index
    %9 = vector.load %arg6[%c0_10, %c0_11] : memref<1x32xf32, #tpu.memory_space<vmem>>, vector<1x32xf32>
    %10 = vector.broadcast %9 : vector<1x32xf32> to vector<8x32xf32>
    %11 = arith.addf %8, %10 : vector<8x32xf32>
    %12 = vector.shape_cast %5 : vector<8x32xf32> to vector<8x4x8xf32>
    %13 = tpu.transpose %12, [1, 0, 2] : vector<8x4x8xf32> -> vector<4x8x8xf32>
    %14 = arith.truncf %13 : vector<4x8x8xf32> to vector<4x8x8xbf16>
    %c0_12 = arith.constant 0 : index
    %c0_13 = arith.constant 0 : index
    %c0_14 = arith.constant 0 : index
    %15 = vector.load %arg7[%c0_12, %c0_13, %c0_14] : memref<4x8x8xbf16, #tpu.memory_space<vmem>>, vector<4x8x8xbf16>
    tpu.vector_store %arg7[%c0_12, %c0_13, %c0_14], %14 {strides = array<i32>} : memref<4x8x8xbf16, #tpu.memory_space<vmem>>, vector<4x8x8xbf16>,
    %16 = vector.shape_cast %11 : vector<8x32xf32> to vector<8x4x8xf32>
    %17 = tpu.transpose %16, [1, 0, 2] : vector<8x4x8xf32> -> vector<4x8x8xf32>
    %18 = arith.truncf %17 : vector<4x8x8xf32> to vector<4x8x8xbf16>
    %c0_15 = arith.constant 0 : index
    %c0_16 = arith.constant 0 : index
    %c0_17 = arith.constant 0 : index
    %19 = vector.load %arg8[%c0_15, %c0_16, %c0_17] : memref<4x8x8xbf16, #tpu.memory_space<vmem>>, vector<4x8x8xbf16>
    tpu.vector_store %arg8[%c0_15, %c0_16, %c0_17], %18 {strides = array<i32>} : memref<4x8x8xbf16, #tpu.memory_space<vmem>>, vector<4x8x8xbf16>,
    return
  }
  func.func @transform_0(%arg0: i32) -> (i32, i32) {
    %c0_i32 = arith.constant 0 : i32
    %c0_i32_0 = arith.constant 0 : i32
    return %arg0, %c0_i32 : i32, i32
  }
  func.func @transform_1(%arg0: i32) -> (i32, i32) {
    %c0_i32 = arith.constant 0 : i32
    %c0_i32_0 = arith.constant 0 : i32
    return %arg0, %c0_i32 : i32, i32
  }
  func.func @transform_2(%arg0: i32) -> (i32, i32) {
    %c0_i32 = arith.constant 0 : i32
    %c0_i32_0 = arith.constant 0 : i32
    %c0_i32_1 = arith.constant 0 : i32
    return %c0_i32, %c0_i32_0 : i32, i32
  }
  func.func @transform_3(%arg0: i32) -> (i32, i32) {
    %c0_i32 = arith.constant 0 : i32
    %c0_i32_0 = arith.constant 0 : i32
    %c0_i32_1 = arith.constant 0 : i32
    return %c0_i32, %c0_i32_0 : i32, i32
  }
  func.func @transform_4(%arg0: i32) -> (i32, i32) {
    %c0_i32 = arith.constant 0 : i32
    %c0_i32_0 = arith.constant 0 : i32
    %c0_i32_1 = arith.constant 0 : i32
    return %c0_i32, %c0_i32_0 : i32, i32
  }
  func.func @transform_5(%arg0: i32) -> (i32, i32) {
    %c0_i32 = arith.constant 0 : i32
    %c0_i32_0 = arith.constant 0 : i32
    %c0_i32_1 = arith.constant 0 : i32
    return %c0_i32, %c0_i32_0 : i32, i32
  }
  func.func @transform_6(%arg0: i32) -> (i32, i32, i32) {
    %c0_i32 = arith.constant 0 : i32
    %c0_i32_0 = arith.constant 0 : i32
    %c0_i32_1 = arith.constant 0 : i32
    return %c0_i32, %arg0, %c0_i32_0 : i32, i32, i32
  }
  func.func @transform_7(%arg0: i32) -> (i32, i32, i32) {
    %c0_i32 = arith.constant 0 : i32
    %c0_i32_0 = arith.constant 0 : i32
    %c0_i32_1 = arith.constant 0 : i32
    return %c0_i32, %arg0, %c0_i32_0 : i32, i32, i32
  }
}

</mosaic_0001>

<llo_original>
// kernel: tpu_custom_call.1
$region0: #{tpu_custom_call.1}
  #allocation0 [shape = 'u32[]', space=smem, size = 0x4, offset = 0x4, fixed_abs, tag = 'smem constant byte address 0x4 - core index']
  #allocation1 [shape = 'u32[144,128]{1,0:T(1,128)}', space=vmem, size = 0x12000, scoped, tag = 'internal scratch']
  %s0 = inlined_call_operand.hbm [shape: bf16[8,32], index: 0, kind: input, shape index: {}]
  %s1 = inlined_call_operand.hbm [shape: bf16[8,32], index: 1, kind: input, shape index: {}]
  %s2 = inlined_call_operand.hbm [shape: bf16[32,32], index: 2, kind: input, shape index: {}]
  %s3 = inlined_call_operand.vmem [shape: f32[1,32], index: 3, kind: input, shape index: {}]
  %s4 = inlined_call_operand.hbm [shape: bf16[32,32], index: 4, kind: input, shape index: {}]
  %s5 = inlined_call_operand.vmem [shape: f32[1,32], index: 5, kind: input, shape index: {}]
  %s6 = inlined_call_operand.hbm [shape: bf16[4,8,8], index: 6, kind: output, shape index: {0}]
  %s7 = inlined_call_operand.hbm [shape: bf16[4,8,8], index: 7, kind: output, shape index: {1}]
  %8 = xla_tuple %s6, %s7
  %s9 = sld [smem:[#allocation0]]
  $region58: #{tpu_custom_call.1} parent=0
    _
  %s11 = ssub.s32 1, %s9
  %s12 = scalar_select 0, %s11, %s9
  $region1: #{tpu_custom_call.1} parent=0
    #allocation2 [shape = 'u8[2048]{0}', space=vmem, size = 0x800, scoped, tag = 'input window, operand 0, single buffered']
    #allocation3 [shape = 's32[1]{0}', space=sflag, size = 0x4, scoped, tag = 'scoped memory for tpu_custom_call.1']
    #allocation4 [shape = 's32[1]{0}', space=sflag, size = 0x4, scoped, tag = 'scoped memory for tpu_custom_call.1']
    #allocation5 [shape = 'u8[2048]{0}', space=vmem, size = 0x800, scoped, tag = 'input window, operand 1, single buffered']
    #allocation6 [shape = 's32[1]{0}', space=sflag, size = 0x4, scoped, tag = 'scoped memory for tpu_custom_call.1']
    #allocation7 [shape = 'u8[8192]{0}', space=vmem, size = 0x2000, scoped, tag = 'input window, operand 2, single buffered']
    #allocation8 [shape = 'u8[8192]{0}', space=vmem, size = 0x2000, scoped, tag = 'input window, operand 4, single buffered']
    #allocation9 [shape = 's32[1]{0}', space=sflag, size = 0x4, scoped, tag = 'scoped memory for tpu_custom_call.1']
    #allocation10 [shape = 'u8[8192]{0}', space=vmem, size = 0x2000, scoped, tag = 'output window, operand 0, single buffered']
    #allocation11 [shape = 'u8[8192]{0}', space=vmem, size = 0x2000, scoped, tag = 'output window, operand 1, single buffered']
    #allocation12 [shape = 's32[1]{0}', space=sflag, size = 0x4, scoped, tag = 'scoped memory for tpu_custom_call.1']
    %13 = vsyncpa [#allocation3], 0
    %14 = vsyncpa [#allocation6], 0
    %15 = vsyncpa [#allocation9], 0
    %16 = vsyncpa [#allocation4], 0
    %17 = vsyncpa [#allocation12], 0
    // Predicated region
    $region2: #{tpu_custom_call.1} parent=1 // pred_check
      _
    $region3: #{tpu_custom_call.1} parent=1 // pred_check_branch
      %19 = sbr.rel (0) target = $region5
    $region4: #{tpu_custom_call.1} parent=1 // pred_region
      %s21 = ssub.s32 64, 64
      %22 = vsyncadd [#allocation3], %s21
      %s24 = sshll.u32 [#allocation2], 4
      %s25 = int_to_ptr.vmem [resolvable:$true] %s24
      %27 = dma.hbm_to_vmem [thread:$0]  %s0, 64, %s25, [#allocation3]
    $region5: #{tpu_custom_call.1} parent=1 // pred_fallthru
      _
    // Predicated region
    $region6: #{tpu_custom_call.1} parent=1 // pred_check
      _
    $region7: #{tpu_custom_call.1} parent=1 // pred_check_branch
      %29 = sbr.rel (0) target = $region9
    $region8: #{tpu_custom_call.1} parent=1 // pred_region
      %s31 = ssub.s32 64, 64
      %32 = vsyncadd [#allocation6], %s31
      %s34 = sshll.u32 [#allocation5], 4
      %s35 = int_to_ptr.vmem [resolvable:$true] %s34
      %37 = dma.hbm_to_vmem [thread:$0]  %s1, 64, %s35, [#allocation6]
    $region9: #{tpu_custom_call.1} parent=1 // pred_fallthru
      _
    // Predicated region
    $region10: #{tpu_custom_call.1} parent=1 // pred_check
      _
    $region11: #{tpu_custom_call.1} parent=1 // pred_check_branch
      %39 = sbr.rel (0) target = $region13
    $region12: #{tpu_custom_call.1} parent=1 // pred_region
      %s41 = ssub.s32 256, 256
      %42 = vsyncadd [#allocation6], %s41
      %s43 = sshll.u32 [#allocation7], 4
      %s44 = int_to_ptr.vmem [resolvable:$true] %s43
      %49 = dma.hbm_to_vmem [thread:$0]  %s2, 256, %s44, [#allocation6], 64, 64, 4
    $region13: #{tpu_custom_call.1} parent=1 // pred_fallthru
      _
    // Predicated region
    $region14: #{tpu_custom_call.1} parent=1 // pred_check
      _
    $region15: #{tpu_custom_call.1} parent=1 // pred_check_branch
      %51 = sbr.rel (0) target = $region17
    $region16: #{tpu_custom_call.1} parent=1 // pred_region
      _
    $region17: #{tpu_custom_call.1} parent=1 // pred_fallthru
      _
    // Predicated region
    $region18: #{tpu_custom_call.1} parent=1 // pred_check
      _
    $region19: #{tpu_custom_call.1} parent=1 // pred_check_branch
      %53 = sbr.rel (0) target = $region21
    $region20: #{tpu_custom_call.1} parent=1 // pred_region
      %s55 = ssub.s32 256, 256
      %56 = vsyncadd [#allocation9], %s55
      %s57 = sshll.u32 [#allocation8], 4
      %s58 = int_to_ptr.vmem [resolvable:$true] %s57
      %63 = dma.hbm_to_vmem [thread:$0]  %s4, 256, %s58, [#allocation9], 64, 64, 4
    $region21: #{tpu_custom_call.1} parent=1 // pred_fallthru
      _
    // Predicated region
    $region22: #{tpu_custom_call.1} parent=1 // pred_check
      _
    $region23: #{tpu_custom_call.1} parent=1 // pred_check_branch
      %65 = sbr.rel (0) target = $region25
    $region24: #{tpu_custom_call.1} parent=1 // pred_region
      _
    $region25: #{tpu_custom_call.1} parent=1 // pred_fallthru
      _
    // Predicated region
    $region26: #{tpu_custom_call.1} parent=1 // pred_check
      _
    $region27: #{tpu_custom_call.1} parent=1 // pred_check_branch
      %67 = sbr.rel (0) target = $region29
    $region28: #{tpu_custom_call.1} parent=1 // pred_region
      %68 = dma.done [#allocation3], 64
    $region29: #{tpu_custom_call.1} parent=1 // pred_fallthru
      _
    // Predicated region
    $region30: #{tpu_custom_call.1} parent=1 // pred_check
      _
    $region31: #{tpu_custom_call.1} parent=1 // pred_check_branch
      %70 = sbr.rel (0) target = $region33
    $region32: #{tpu_custom_call.1} parent=1 // pred_region
      %71 = dma.done [#allocation6], 64
    $region33: #{tpu_custom_call.1} parent=1 // pred_fallthru
      _
    // Predicated region
    $region34: #{tpu_custom_call.1} parent=1 // pred_check
      _
    $region35: #{tpu_custom_call.1} parent=1 // pred_check_branch
      %73 = sbr.rel (0) target = $region37
    $region36: #{tpu_custom_call.1} parent=1 // pred_region
      %74 = dma.done [#allocation6], 256
    $region37: #{tpu_custom_call.1} parent=1 // pred_fallthru
      _
    // Predicated region
    $region38: #{tpu_custom_call.1} parent=1 // pred_check
      _
    $region39: #{tpu_custom_call.1} parent=1 // pred_check_branch
      %76 = sbr.rel (0) target = $region41
    $region40: #{tpu_custom_call.1} parent=1 // pred_region
      %77 = dma.done [#allocation9], 256
    $region41: #{tpu_custom_call.1} parent=1 // pred_fallthru
      _
    %v79 = vld [vmem:[#allocation2] sm:$0xf]
    %v80 = vld [vmem:[#allocation7] sm:$0xf]
    %v81 = vld [vmem:[#allocation7 + $0x4] sm:$0xf]
    %v82 = vld [vmem:[#allocation7 + $0x8] sm:$0xf]
    %v83 = vld [vmem:[#allocation7 + $0xc] sm:$0xf]
    %v84 = vld [vmem:[%s3] sm:$0x1]
    %v86 = vlaneseq
    %v87 = vshrl.u32 %v86, 7
    %v88 = vsub.s32 0, %v87
    %v89 = vrot.slane %v84, %v88
    %v95 = vunpack.c.l.b16 %v80
    %v96 = vunpack.c.l.b16 %v81
    %v97 = vunpack.c.l.b16 %v82
    %v98 = vunpack.c.l.b16 %v83
    %v99 = vpack.c.b16 %v96, %v95
    %v100 = vpack.c.b16 %v98, %v97
    %vm103 = vcmask 261120
    %v105 = vsel %vm103, %v79, 0
    %107 = vmatprep.subr.bf16.mxu0 0
    %108 = vmatpush1.bf16.msra.mxu0 0
    %109 = vmatprep.subr.bf16.mxu0 0
    %110 = vmatpush1.bf16.msra.mxu0 0
    %111 = vmatprep.subr.bf16.mxu0 0
    %112 = vmatpush1.bf16.msra.mxu0 0
    %113 = vmatprep.subr.bf16.mxu0 0
    %114 = vmatpush1.bf16.msra.mxu0 0
    %115 = vmatprep.subr.bf16.mxu0 0
    %116 = vmatpush1.bf16.msra.mxu0 0
    %117 = vmatprep.subr.bf16.mxu0 0
    %118 = vmatpush1.bf16.msra.mxu0 0
    %119 = vmatprep.subr.bf16.mxu0 0
    %120 = vmatpush1.bf16.msra.mxu0 %v100
    %121 = vmatprep.subr.bf16.mxu0 0
    %122 = vmatpush1.bf16.msra.mxu0 %v99
    %123 = vmatprep.subr.bf16.mxu0 0
    %124 = vmatpush2.bf16.msra.mxu0 0
    %125 = vmatprep.subr.bf16.mxu0 0
    %126 = vmatpush2.bf16.msra.mxu0 0
    %127 = vmatprep.subr.bf16.mxu0 0
    %128 = vmatpush2.bf16.msra.mxu0 0
    %129 = vmatprep.subr.bf16.mxu0 0
    %130 = vmatpush2.bf16.msra.mxu0 0
    %131 = vmatprep.subr.bf16.mxu0 0
    %132 = vmatpush2.bf16.msra.mxu0 0
    %133 = vmatprep.subr.bf16.mxu0 0
    %134 = vmatpush2.bf16.msra.mxu0 0
    %135 = vmatprep.subr.bf16.mxu0 0
    %136 = vmatpush2.bf16.msra.mxu0 0
    %137 = vmatprep.subr.bf16.mxu0 0
    %138 = vmatpush2.bf16.msra.mxu0 0
    %139 = vmatprep.mubr.bf16.mxu0 0
    %140 = vmatmul.mubr.bf16.gmra.mxu0 %v105
    %v141 = vpop.f32.mrf.mxu0
    %v142 = vadd.f32 %v89, %v141
    %v143 = vpop.f32.mrf.mxu0
    %v144 = vpop.f32.mrf.mxu0
    %v145 = vpop.f32.mrf.mxu0
    %146 = vdwg.mxu0
    %v147 = vld [vmem:[#allocation5] sm:$0xf]
    %v148 = vld [vmem:[#allocation8] sm:$0xf]
    %v149 = vld [vmem:[#allocation8 + $0x4] sm:$0xf]
    %v150 = vld [vmem:[#allocation8 + $0x8] sm:$0xf]
    %v151 = vld [vmem:[#allocation8 + $0xc] sm:$0xf]
    %v152 = vld [vmem:[%s5] sm:$0x1]
    %v154 = vlaneseq
    %v155 = vshrl.u32 %v154, 7
    %v156 = vsub.s32 0, %v155
    %v157 = vrot.slane %v152, %v156
    %v163 = vunpack.c.l.b16 %v148
    %v164 = vunpack.c.l.b16 %v149
    %v165 = vunpack.c.l.b16 %v150
    %v166 = vunpack.c.l.b16 %v151
    %v167 = vpack.c.b16 %v164, %v163
    %v168 = vpack.c.b16 %v166, %v165
    %v172 = vsel %vm103, %v147, 0
    %174 = vmatprep.subr.bf16.mxu0 0
    %175 = vmatpush1.bf16.msra.mxu0 0
    %176 = vmatprep.subr.bf16.mxu0 0
    %177 = vmatpush1.bf16.msra.mxu0 0
    %178 = vmatprep.subr.bf16.mxu0 0
    %179 = vmatpush1.bf16.msra.mxu0 0
    %180 = vmatprep.subr.bf16.mxu0 0
    %181 = vmatpush1.bf16.msra.mxu0 0
    %182 = vmatprep.subr.bf16.mxu0 0
    %183 = vmatpush1.bf16.msra.mxu0 0
    %184 = vmatprep.subr.bf16.mxu0 0
    %185 = vmatpush1.bf16.msra.mxu0 0
    %186 = vmatprep.subr.bf16.mxu0 0
    %187 = vmatpush1.bf16.msra.mxu0 %v168
    %188 = vmatprep.subr.bf16.mxu0 0
    %189 = vmatpush1.bf16.msra.mxu0 %v167
    %190 = vmatprep.subr.bf16.mxu0 0
    %191 = vmatpush2.bf16.msra.mxu0 0
    %192 = vmatprep.subr.bf16.mxu0 0
    %193 = vmatpush2.bf16.msra.mxu0 0
    %194 = vmatprep.subr.bf16.mxu0 0
    %195 = vmatpush2.bf16.msra.mxu0 0
    %196 = vmatprep.subr.bf16.mxu0 0
    %197 = vmatpush2.bf16.msra.mxu0 0
    %198 = vmatprep.subr.bf16.mxu0 0
    %199 = vmatpush2.bf16.msra.mxu0 0
    %200 = vmatprep.subr.bf16.mxu0 0
    %201 = vmatpush2.bf16.msra.mxu0 0
    %202 = vmatprep.subr.bf16.mxu0 0
    %203 = vmatpush2.bf16.msra.mxu0 0
    %204 = vmatprep.subr.bf16.mxu0 0
    %205 = vmatpush2.bf16.msra.mxu0 0
    %206 = vmatprep.mubr.bf16.mxu0 0
    %207 = vmatmul.mubr.bf16.gmra.mxu0 %v172
    %v208 = vpop.f32.mrf.mxu0
    %v209 = vadd.f32 %v157, %v208
    %v210 = vpop.f32.mrf.mxu0
    %v211 = vpop.f32.mrf.mxu0
    %v212 = vpop.f32.mrf.mxu0
    %213 = vdwg.mxu0
    %215 = vrot.lane.b32.xlu0 %v142, 120
    %v216 = vpop.permute.xlu0 %215
    %218 = vrot.lane.b32.xlu0 %v142, 112
    %v219 = vpop.permute.xlu0 %218
    %221 = vrot.lane.b32.xlu0 %v142, 104
    %v222 = vpop.permute.xlu0 %221
    %v224 = vcombine.low %v142, %v219
    %v225 = vcombine.high %v142, %v219
    %v227 = vunpack.c.l.s4 1983009808
    %v228 = vunpack.c.0.s8 %v227
    %v229 = vlaneseq
    %v230 = vshrl.u32 %v229, 7
    %v231 = vsub.s32 %v228, %v230
    %v232 = vrot.slane %v224, %v231
    %v234 = vunpack.c.l.s4 1983009808
    %v235 = vunpack.c.0.s8 %v234
    %v236 = vlaneseq
    %v237 = vshrl.u32 %v236, 7
    %v238 = vsub.s32 %v235, %v237
    %v239 = vrot.slane %v225, %v238
    %v240 = vcombine.low %v216, %v222
    %v241 = vcombine.high %v216, %v222
    %v243 = vunpack.c.l.s4 1983009808
    %v244 = vunpack.c.0.s8 %v243
    %v245 = vlaneseq
    %v246 = vshrl.u32 %v245, 7
    %v247 = vsub.s32 %v244, %v246
    %v248 = vrot.slane %v240, %v247
    %v250 = vunpack.c.l.s4 1983009808
    %v251 = vunpack.c.0.s8 %v250
    %v252 = vlaneseq
    %v253 = vshrl.u32 %v252, 7
    %v254 = vsub.s32 %v251, %v253
    %v255 = vrot.slane %v241, %v254
    %v256 = vcombine.low %v232, %v248
    %v257 = vcombine.high %v232, %v248
    %v259 = vunpack.c.l.s4 1934713408
    %v260 = vunpack.c.0.s8 %v259
    %v261 = vlaneseq
    %v262 = vshrl.u32 %v261, 7
    %v263 = vsub.s32 %v260, %v262
    %v264 = vrot.slane %v256, %v263
    %v266 = vunpack.c.l.s4 1934713408
    %v267 = vunpack.c.0.s8 %v266
    %v268 = vlaneseq
    %v269 = vshrl.u32 %v268, 7
    %v270 = vsub.s32 %v267, %v269
    %v271 = vrot.slane %v257, %v270
    %v272 = vcombine.low %v239, %v255
    %v273 = vcombine.high %v239, %v255
    %v275 = vunpack.c.l.s4 1934713408
    %v276 = vunpack.c.0.s8 %v275
    %v277 = vlaneseq
    %v278 = vshrl.u32 %v277, 7
    %v279 = vsub.s32 %v276, %v278
    %v280 = vrot.slane %v272, %v279
    %v282 = vunpack.c.l.s4 1934713408
    %v283 = vunpack.c.0.s8 %v282
    %v284 = vlaneseq
    %v285 = vshrl.u32 %v284, 7
    %v286 = vsub.s32 %v283, %v285
    %v287 = vrot.slane %v273, %v286
    %v288 = vcombine.high %v264, 0.0
    %v289 = vcombine.high %v271, 0.0
    %v290 = vcombine.high %v280, 0.0
    %v291 = vcombine.high %v287, 0.0
    %v292 = vcombine.low %v264, %v271
    %v294 = vunpack.c.l.s4 1983009808
    %v295 = vunpack.c.0.s8 %v294
    %v296 = vlaneseq
    %v297 = vshrl.u32 %v296, 7
    %v298 = vsub.s32 %v295, %v297
    %v299 = vrot.slane %v292, %v298
    %v300 = vcombine.low %v288, %v289
    %v302 = vunpack.c.l.s4 1983009808
    %v303 = vunpack.c.0.s8 %v302
    %v304 = vlaneseq
    %v305 = vshrl.u32 %v304, 7
    %v306 = vsub.s32 %v303, %v305
    %v307 = vrot.slane %v300, %v306
    %v308 = vcombine.low %v280, %v287
    %v310 = vunpack.c.l.s4 1983009808
    %v311 = vunpack.c.0.s8 %v310
    %v312 = vlaneseq
    %v313 = vshrl.u32 %v312, 7
    %v314 = vsub.s32 %v311, %v313
    %v315 = vrot.slane %v308, %v314
    %v316 = vcombine.low %v290, %v291
    %v318 = vunpack.c.l.s4 1983009808
    %v319 = vunpack.c.0.s8 %v318
    %v320 = vlaneseq
    %v321 = vshrl.u32 %v320, 7
    %v322 = vsub.s32 %v319, %v321
    %v323 = vrot.slane %v316, %v322
    %v324 = vcombine.low %v299, %v307
    %v325 = vcombine.high %v299, %v307
    %v327 = vunpack.c.l.s4 1934713408
    %v328 = vunpack.c.0.s8 %v327
    %v329 = vlaneseq
    %v330 = vshrl.u32 %v329, 7
    %v331 = vsub.s32 %v328, %v330
    %v332 = vrot.slane %v324, %v331
    %v334 = vunpack.c.l.s4 1934713408
    %v335 = vunpack.c.0.s8 %v334
    %v336 = vlaneseq
    %v337 = vshrl.u32 %v336, 7
    %v338 = vsub.s32 %v335, %v337
    %v339 = vrot.slane %v325, %v338
    %v340 = vcombine.low %v315, %v323
    %v341 = vcombine.high %v315, %v323
    %v343 = vunpack.c.l.s4 1934713408
    %v344 = vunpack.c.0.s8 %v343
    %v345 = vlaneseq
    %v346 = vshrl.u32 %v345, 7
    %v347 = vsub.s32 %v344, %v346
    %v348 = vrot.slane %v340, %v347
    %v350 = vunpack.c.l.s4 1934713408
    %v351 = vunpack.c.0.s8 %v350
    %v352 = vlaneseq
    %v353 = vshrl.u32 %v352, 7
    %v354 = vsub.s32 %v351, %v353
    %v355 = vrot.slane %v341, %v354
    %v356 = vcombine.low %v332, %v348
    %v357 = vcombine.high %v332, %v348
    %v358 = vcombine.low %v339, %v355
    %v359 = vcombine.high %v339, %v355
    %v360 = vpack.c.bf16 %v356, %v356
    %v361 = vpack.c.bf16 %v357, %v357
    %v362 = vpack.c.bf16 %v358, %v358
    %v363 = vpack.c.bf16 %v359, %v359
    %vm364 = vcmask 60416
    %365 = vst.msk [vmem:[#allocation10] sm:$0xf] %vm364, %v360
    %366 = vst.msk [vmem:[#allocation10 + $0x4] sm:$0xf] %vm364, %v361
    %367 = vst.msk [vmem:[#allocation10 + $0x8] sm:$0xf] %vm364, %v362
    %368 = vst.msk [vmem:[#allocation10 + $0xc] sm:$0xf] %vm364, %v363
    %370 = vrot.lane.b32.xlu0 %v209, 120
    %v371 = vpop.permute.xlu0 %370
    %373 = vrot.lane.b32.xlu0 %v209, 112
    %v374 = vpop.permute.xlu0 %373
    %376 = vrot.lane.b32.xlu0 %v209, 104
    %v377 = vpop.permute.xlu0 %376
    %v379 = vcombine.low %v209, %v374
    %v380 = vcombine.high %v209, %v374
    %v382 = vunpack.c.l.s4 1983009808
    %v383 = vunpack.c.0.s8 %v382
    %v384 = vlaneseq
    %v385 = vshrl.u32 %v384, 7
    %v386 = vsub.s32 %v383, %v385
    %v387 = vrot.slane %v379, %v386
    %v389 = vunpack.c.l.s4 1983009808
    %v390 = vunpack.c.0.s8 %v389
    %v391 = vlaneseq
    %v392 = vshrl.u32 %v391, 7
    %v393 = vsub.s32 %v390, %v392
    %v394 = vrot.slane %v380, %v393
    %v395 = vcombine.low %v371, %v377
    %v396 = vcombine.high %v371, %v377
    %v398 = vunpack.c.l.s4 1983009808
    %v399 = vunpack.c.0.s8 %v398
    %v400 = vlaneseq
    %v401 = vshrl.u32 %v400, 7
    %v402 = vsub.s32 %v399, %v401
    %v403 = vrot.slane %v395, %v402
    %v405 = vunpack.c.l.s4 1983009808
    %v406 = vunpack.c.0.s8 %v405
    %v407 = vlaneseq
    %v408 = vshrl.u32 %v407, 7
    %v409 = vsub.s32 %v406, %v408
    %v410 = vrot.slane %v396, %v409
    %v411 = vcombine.low %v387, %v403
    %v412 = vcombine.high %v387, %v403
    %v414 = vunpack.c.l.s4 1934713408
    %v415 = vunpack.c.0.s8 %v414
    %v416 = vlaneseq
    %v417 = vshrl.u32 %v416, 7
    %v418 = vsub.s32 %v415, %v417
    %v419 = vrot.slane %v411, %v418
    %v421 = vunpack.c.l.s4 1934713408
    %v422 = vunpack.c.0.s8 %v421
    %v423 = vlaneseq
    %v424 = vshrl.u32 %v423, 7
    %v425 = vsub.s32 %v422, %v424
    %v426 = vrot.slane %v412, %v425
    %v427 = vcombine.low %v394, %v410
    %v428 = vcombine.high %v394, %v410
    %v430 = vunpack.c.l.s4 1934713408
    %v431 = vunpack.c.0.s8 %v430
    %v432 = vlaneseq
    %v433 = vshrl.u32 %v432, 7
    %v434 = vsub.s32 %v431, %v433
    %v435 = vrot.slane %v427, %v434
    %v437 = vunpack.c.l.s4 1934713408
    %v438 = vunpack.c.0.s8 %v437
    %v439 = vlaneseq
    %v440 = vshrl.u32 %v439, 7
    %v441 = vsub.s32 %v438, %v440
    %v442 = vrot.slane %v428, %v441
    %v443 = vcombine.high %v419, 0.0
    %v444 = vcombine.high %v426, 0.0
    %v445 = vcombine.high %v435, 0.0
    %v446 = vcombine.high %v442, 0.0
    %v447 = vcombine.low %v419, %v426
    %v449 = vunpack.c.l.s4 1983009808
    %v450 = vunpack.c.0.s8 %v449
    %v451 = vlaneseq
    %v452 = vshrl.u32 %v451, 7
    %v453 = vsub.s32 %v450, %v452
    %v454 = vrot.slane %v447, %v453
    %v455 = vcombine.low %v443, %v444
    %v457 = vunpack.c.l.s4 1983009808
    %v458 = vunpack.c.0.s8 %v457
    %v459 = vlaneseq
    %v460 = vshrl.u32 %v459, 7
    %v461 = vsub.s32 %v458, %v460
    %v462 = vrot.slane %v455, %v461
    %v463 = vcombine.low %v435, %v442
    %v465 = vunpack.c.l.s4 1983009808
    %v466 = vunpack.c.0.s8 %v465
    %v467 = vlaneseq
    %v468 = vshrl.u32 %v467, 7
    %v469 = vsub.s32 %v466, %v468
    %v470 = vrot.slane %v463, %v469
    %v471 = vcombine.low %v445, %v446
    %v473 = vunpack.c.l.s4 1983009808
    %v474 = vunpack.c.0.s8 %v473
    %v475 = vlaneseq
    %v476 = vshrl.u32 %v475, 7
    %v477 = vsub.s32 %v474, %v476
    %v478 = vrot.slane %v471, %v477
    %v479 = vcombine.low %v454, %v462
    %v480 = vcombine.high %v454, %v462
    %v482 = vunpack.c.l.s4 1934713408
    %v483 = vunpack.c.0.s8 %v482
    %v484 = vlaneseq
    %v485 = vshrl.u32 %v484, 7
    %v486 = vsub.s32 %v483, %v485
    %v487 = vrot.slane %v479, %v486
    %v489 = vunpack.c.l.s4 1934713408
    %v490 = vunpack.c.0.s8 %v489
    %v491 = vlaneseq
    %v492 = vshrl.u32 %v491, 7
    %v493 = vsub.s32 %v490, %v492
    %v494 = vrot.slane %v480, %v493
    %v495 = vcombine.low %v470, %v478
    %v496 = vcombine.high %v470, %v478
    %v498 = vunpack.c.l.s4 1934713408
    %v499 = vunpack.c.0.s8 %v498
    %v500 = vlaneseq
    %v501 = vshrl.u32 %v500, 7
    %v502 = vsub.s32 %v499, %v501
    %v503 = vrot.slane %v495, %v502
    %v505 = vunpack.c.l.s4 1934713408
    %v506 = vunpack.c.0.s8 %v505
    %v507 = vlaneseq
    %v508 = vshrl.u32 %v507, 7
    %v509 = vsub.s32 %v506, %v508
    %v510 = vrot.slane %v496, %v509
    %v511 = vcombine.low %v487, %v503
    %v512 = vcombine.high %v487, %v503
    %v513 = vcombine.low %v494, %v510
    %v514 = vcombine.high %v494, %v510
    %v515 = vpack.c.bf16 %v511, %v511
    %v516 = vpack.c.bf16 %v512, %v512
    %v517 = vpack.c.bf16 %v513, %v513
    %v518 = vpack.c.bf16 %v514, %v514
    %519 = vst.msk [vmem:[#allocation11] sm:$0xf] %vm364, %v515
    %520 = vst.msk [vmem:[#allocation11 + $0x4] sm:$0xf] %vm364, %v516
    %521 = vst.msk [vmem:[#allocation11 + $0x8] sm:$0xf] %vm364, %v517
    %522 = vst.msk [vmem:[#allocation11 + $0xc] sm:$0xf] %vm364, %v518
    // Predicated region
    $region42: #{tpu_custom_call.1} parent=1 // pred_check
      _
    $region43: #{tpu_custom_call.1} parent=1 // pred_check_branch
      %524 = sbr.rel (0) target = $region45
    $region44: #{tpu_custom_call.1} parent=1 // pred_region
      %s526 = ssub.s32 256, 256
      %527 = vsyncadd [#allocation4], %s526
      %s528 = sshll.u32 [#allocation10], 4
      %s529 = int_to_ptr.vmem [resolvable:$true] %s528
      %534 = dma.vmem_to_hbm [thread:$0]  %s529, 256, %s6, [#allocation4], 64, 64, 4
    $region45: #{tpu_custom_call.1} parent=1 // pred_fallthru
      _
    // Predicated region
    $region46: #{tpu_custom_call.1} parent=1 // pred_check
      _
    $region47: #{tpu_custom_call.1} parent=1 // pred_check_branch
      %536 = sbr.rel (0) target = $region49
    $region48: #{tpu_custom_call.1} parent=1 // pred_region
      %s538 = ssub.s32 256, 256
      %539 = vsyncadd [#allocation12], %s538
      %s540 = sshll.u32 [#allocation11], 4
      %s541 = int_to_ptr.vmem [resolvable:$true] %s540
      %546 = dma.vmem_to_hbm [thread:$0]  %s541, 256, %s7, [#allocation12], 64, 64, 4
    $region49: #{tpu_custom_call.1} parent=1 // pred_fallthru
      _
    // Predicated region
    $region50: #{tpu_custom_call.1} parent=1 // pred_check
      _
    $region51: #{tpu_custom_call.1} parent=1 // pred_check_branch
      %548 = sbr.rel (0) target = $region53
    $region52: #{tpu_custom_call.1} parent=1 // pred_region
      %549 = dma.done [#allocation4], 256
    $region53: #{tpu_custom_call.1} parent=1 // pred_fallthru
      _
    // Predicated region
    $region54: #{tpu_custom_call.1} parent=1 // pred_check
      _
    $region55: #{tpu_custom_call.1} parent=1 // pred_check_branch
      %551 = sbr.rel (0) target = $region57
    $region56: #{tpu_custom_call.1} parent=1 // pred_region
      %552 = dma.done [#allocation12], 256
    $region57: #{tpu_custom_call.1} parent=1 // pred_fallthru
      _
    %553 = vsyncpa [#allocation3], 1
    %554 = vsyncpa [#allocation6], 1
    %555 = vsyncpa [#allocation9], 1
    %556 = vsyncpa [#allocation4], 1
    %557 = vsyncpa [#allocation12], 1

</llo_original>
